<compile_context>
chip_gen: v7x
topology: tpu7x:2x2x1
jax: 0.10.0
libtpu: 0.0.40
codegen_flags: <defaults>
</compile_context>

<pallas_src>
import functools

import jax
import jax.numpy as jnp
from jax.experimental import pallas as pl
from jax.experimental.pallas import tpu as pltpu

IN_F = 784
HID = 128
OUT_F = 1


def _discriminator_kernel(x_ref, w1_ref, b1_ref, w2_ref, b2_ref, o_ref):
    # x tile: [TM, 784] f32 | w1: [784, 128] bf16 | b1: [1, 128] f32
    # w2: [1, 128] f32 (row layout) | b2: [1, 1] f32 scalar in SMEM
    x = x_ref[...]

    # ---- Linear(784 -> 128): bf16 operands on the MXU, f32 accumulation ----
    h = jnp.dot(
        x.astype(jnp.bfloat16),
        w1_ref[...],
        preferred_element_type=jnp.float32,
    )
    h = h + b1_ref[...]

    # ---- LeakyReLU(0.2) in f32 on the VPU ----
    h = jnp.where(h >= 0.0, h, 0.2 * h)

    # ---- Linear(128 -> 1): VPU broadcast-multiply + XLU lane reduction ----
    z = jnp.sum(h * w2_ref[...], axis=-1, keepdims=True) + b2_ref[0, 0]

    # ---- Sigmoid, numerically stable (no inf from exp of large |z|) ----
    a = jnp.exp(-jnp.abs(z))          # EUP
    inv = 1.0 / (1.0 + a)
    o_ref[...] = jnp.where(z >= 0.0, inv, a * inv)


def _pick_tile(batch, tm):
    """Static (trace-time) batch-tile selection.

    Sublane-align, clamp for small batches, and guarantee >=2 grid steps so
    the 'parallel' batch axis can shard across v7x's two TensorCores.
    """
    tm = max(8, (min(tm, pl.cdiv(batch, 8) * 8) // 8) * 8)
    if pl.cdiv(batch, tm) < 2 and batch > 8:
        tm = pl.cdiv(pl.cdiv(batch, 2), 8) * 8
    return tm


@functools.partial(jax.jit, static_argnames=("tm",))
def discriminator_forward(x, w1_bf16, b1, w2_row, b2_scalar, *, tm=1024):
    """x: [B, 784] f32 (bf16 x also works and halves the dominant HBM stream).

    w1_bf16: [784, 128] bf16, b1: [1, 128] f32, w2_row: [1, 128] f32,
    b2_scalar: [1, 1] f32 -- as produced by prepare_params().
    """
    B = x.shape[0]
    tm = _pick_tile(B, tm)
    grid = (pl.cdiv(B, tm),)   # ragged last block handled by Pallas (no host pad)

    return pl.pallas_call(
        _discriminator_kernel,
        out_shape=jax.ShapeDtypeStruct((B, OUT_F), jnp.float32),
        grid=grid,
        in_specs=[
            pl.BlockSpec((tm, IN_F), lambda i: (i, 0)),    # x: tiled over batch
            pl.BlockSpec((IN_F, HID), lambda i: (0, 0)),   # w1: resident
            pl.BlockSpec((1, HID), lambda i: (0, 0)),      # b1: resident
            pl.BlockSpec((1, HID), lambda i: (0, 0)),      # w2 row: resident
            pl.BlockSpec(memory_space=pltpu.MemorySpace.SMEM),  # b2 scalar
        ],
        out_specs=pl.BlockSpec((tm, OUT_F), lambda i: (i, 0)),
        compiler_params=pltpu.CompilerParams(
            dimension_semantics=("parallel",),
        ),
    )(x, w1_bf16, b1, w2_row, b2_scalar)


def init_params(key):
    """Matches PyTorch nn.Linear default init U(-1/sqrt(fan_in), 1/sqrt(fan_in))."""
    k1, k2, k3, k4 = jax.random.split(key, 4)
    bound1 = 1.0 / jnp.sqrt(jnp.float32(IN_F))
    bound2 = 1.0 / jnp.sqrt(jnp.float32(HID))
    # Stored as [in, out] (transposed vs. PyTorch's [out, in]) so kernel does x @ W.
    w1 = jax.random.uniform(k1, (IN_F, HID), jnp.float32, -bound1, bound1)
    b1 = jax.random.uniform(k2, (1, HID), jnp.float32, -bound1, bound1)
    w2 = jax.random.uniform(k3, (HID, OUT_F), jnp.float32, -bound2, bound2)
    b2 = jax.random.uniform(k4, (1, OUT_F), jnp.float32, -bound2, bound2)
    return w1, b1, w2, b2


def prepare_params(w1, b1, w2, b2):
    """One-time conversion to the kernel's resident-weight layout.

    Hoisted out of the jitted forward so the bf16 cast / reshapes are not
    re-emitted as un-fused XLA ops on every call.
    """
    w1_bf16 = w1.astype(jnp.bfloat16)                       # halves w1 HBM traffic
    b1_row = jnp.reshape(b1, (1, HID)).astype(jnp.float32)
    w2_row = jnp.reshape(w2, (1, HID)).astype(jnp.float32)  # (128,1) -> (1,128)
    b2_scalar = jnp.reshape(b2, (1, 1)).astype(jnp.float32)
    return w1_bf16, b1_row, w2_row, b2_scalar


if __name__ == "__main__":
    key = jax.random.PRNGKey(0)
    kx, kp = jax.random.split(key)

    # Deliberately NOT a multiple of the tile: exercises the ragged last
    # block (no host-side pad) and the >=2-grid-step tile shrink.
    B = 13
    x = jax.random.normal(kx, (B, IN_F), jnp.float32)
    w1, b1, w2, b2 = init_params(kp)
    params = prepare_params(w1, b1, w2, b2)

    out = discriminator_forward(x, *params)   # auto tile -> tm=8, grid=(2,)
    out = jax.block_until_ready(out)
    assert out.shape == (B, OUT_F)
    assert bool(jnp.all(jnp.isfinite(out)))

    # Reference 1: same precision recipe as the kernel (bf16 matmul, f32 acc).
    h = jnp.dot(x.astype(jnp.bfloat16), w1.astype(jnp.bfloat16),
                preferred_element_type=jnp.float32) + b1
    h = jnp.where(h >= 0.0, h, 0.2 * h)
    ref_bf16 = jax.nn.sigmoid(h @ w2 + b2)
    assert jnp.allclose(out, ref_bf16, atol=2e-4, rtol=1e-4), "mismatch vs bf16 ref"

    # Reference 2: full-f32 PyTorch-equivalent forward (looser tol due to bf16 MXU).
    h32 = x @ w1 + b1
    h32 = jnp.where(h32 >= 0.0, h32, 0.2 * h32)
    ref_f32 = jax.nn.sigmoid(h32 @ w2 + b2)
    assert jnp.allclose(out, ref_f32, atol=3e-2), "mismatch vs f32 ref"

    print("KERNEL_OK")
</pallas_src>

<mosaic_0001>
module attributes {stable_mosaic.version = 11 : i64} {
  func.func @_discriminator_kernel(%arg0: i32, %arg1: memref<8x784xf32, #tpu.memory_space<vmem>>, %arg2: memref<784x128xbf16, #tpu.memory_space<vmem>>, %arg3: memref<1x128xf32, #tpu.memory_space<vmem>>, %arg4: memref<1x128xf32, #tpu.memory_space<vmem>>, %arg5: memref<1x1xf32, #tpu.memory_space<smem>>, %arg6: memref<8x1xf32, #tpu.memory_space<vmem>>) attributes {dimension_semantics = [#tpu.dimension_semantics<parallel>], iteration_bounds = array<i64: 2>, scalar_prefetch = 0 : i64, scratch_operands = 0 : i64, tpu.core_type = #tpu.core_type<tc>, window_params = [{transform_indices = @transform_0, window_bounds = array<i64: 8, 784>}, {pipeline_mode = #tpu.pipeline_mode<synchronous>, transform_indices = @transform_1, window_bounds = array<i64: 784, 128>}, {pipeline_mode = #tpu.pipeline_mode<synchronous>, transform_indices = @transform_2, window_bounds = array<i64: 1, 128>}, {pipeline_mode = #tpu.pipeline_mode<synchronous>, transform_indices = @transform_3, window_bounds = array<i64: 1, 128>}, {transform_indices = @transform_4, window_bounds = array<i64: 1, 1>}, {transform_indices = @transform_5, window_bounds = array<i64: 8, 1>}]} {
    %c0 = arith.constant 0 : index
    %c0_0 = arith.constant 0 : index
    %0 = vector.load %arg1[%c0, %c0_0] : memref<8x784xf32, #tpu.memory_space<vmem>>, vector<8x784xf32>
    %1 = arith.truncf %0 : vector<8x784xf32> to vector<8x784xbf16>
    %c0_1 = arith.constant 0 : index
    %c0_2 = arith.constant 0 : index
    %2 = vector.load %arg2[%c0_1, %c0_2] : memref<784x128xbf16, #tpu.memory_space<vmem>>, vector<784x128xbf16>
    %cst = arith.constant dense<0.000000e+00> : vector<8x128xf32>
    %3 = tpu.matmul %1, %2, %cst {dimension_numbers = #tpu.dot_dimension_numbers<[1], [0], [0], [1], [0, 0, 1, 1], [], []>} : vector<8x784xbf16>, vector<784x128xbf16>, vector<8x128xf32> -> vector<8x128xf32>
    %c0_3 = arith.constant 0 : index
    %c0_4 = arith.constant 0 : index
    %4 = vector.load %arg3[%c0_3, %c0_4] : memref<1x128xf32, #tpu.memory_space<vmem>>, vector<1x128xf32>
    %5 = vector.broadcast %4 : vector<1x128xf32> to vector<8x128xf32>
    %6 = arith.addf %3, %5 : vector<8x128xf32>
    %cst_5 = arith.constant 0.000000e+00 : f32
    %7 = vector.broadcast %cst_5 : f32 to vector<8x128xf32>
    %8 = arith.cmpf oge, %6, %7 : vector<8x128xf32>
    %cst_6 = arith.constant 2.000000e-01 : f32
    %9 = vector.broadcast %cst_6 : f32 to vector<8x128xf32>
    %10 = arith.mulf %9, %6 : vector<8x128xf32>
    %11 = arith.select %8, %6, %10 : vector<8x128xi1>, vector<8x128xf32>
    %c0_7 = arith.constant 0 : index
    %c0_8 = arith.constant 0 : index
    %12 = vector.load %arg4[%c0_7, %c0_8] : memref<1x128xf32, #tpu.memory_space<vmem>>, vector<1x128xf32>
    %13 = vector.broadcast %12 : vector<1x128xf32> to vector<8x128xf32>
    %14 = arith.mulf %11, %13 : vector<8x128xf32>
    %cst_9 = arith.constant dense<0.000000e+00> : vector<8xf32>
    %15 = vector.multi_reduction <add>, %14, %cst_9 [1] : vector<8x128xf32> to vector<8xf32>
    %16 = vector.shape_cast %15 : vector<8xf32> to vector<8x1xf32>
    %c0_10 = arith.constant 0 : index
    %c0_11 = arith.constant 0 : index
    %17 = memref.load %arg5[%c0_10, %c0_11] : memref<1x1xf32, #tpu.memory_space<smem>>
    %18 = vector.broadcast %17 : f32 to vector<8x1xf32>
    %19 = arith.addf %16, %18 : vector<8x1xf32>
    %20 = math.absf %19 : vector<8x1xf32>
    %cst_12 = arith.constant 0.000000e+00 : f32
    %21 = vector.broadcast %cst_12 : f32 to vector<8x1xf32>
    %22 = arith.subf %21, %20 : vector<8x1xf32>
    %23 = math.exp %22 : vector<8x1xf32>
    %cst_13 = arith.constant 1.000000e+00 : f32
    %24 = vector.broadcast %cst_13 : f32 to vector<8x1xf32>
    %25 = arith.addf %24, %23 : vector<8x1xf32>
    %cst_14 = arith.constant 1.000000e+00 : f32
    %26 = vector.broadcast %cst_14 : f32 to vector<8x1xf32>
    %27 = arith.divf %26, %25 : vector<8x1xf32>
    %cst_15 = arith.constant 0.000000e+00 : f32
    %28 = vector.broadcast %cst_15 : f32 to vector<8x1xf32>
    %29 = arith.cmpf oge, %19, %28 : vector<8x1xf32>
    %30 = arith.mulf %23, %27 : vector<8x1xf32>
    %31 = arith.select %29, %27, %30 : vector<8x1xi1>, vector<8x1xf32>
    %c0_16 = arith.constant 0 : index
    %c0_17 = arith.constant 0 : index
    %32 = vector.load %arg6[%c0_16, %c0_17] : memref<8x1xf32, #tpu.memory_space<vmem>>, vector<8x1xf32>
    tpu.vector_store %arg6[%c0_16, %c0_17], %31 {strides = array<i32>} : memref<8x1xf32, #tpu.memory_space<vmem>>, vector<8x1xf32>,
    return
  }
  func.func @transform_0(%arg0: i32) -> (i32, i32) {
    %c0_i32 = arith.constant 0 : i32
    %c0_i32_0 = arith.constant 0 : i32
    return %arg0, %c0_i32 : i32, i32
  }
  func.func @transform_1(%arg0: i32) -> (i32, i32) {
    %c0_i32 = arith.constant 0 : i32
    %c0_i32_0 = arith.constant 0 : i32
    %c0_i32_1 = arith.constant 0 : i32
    return %c0_i32, %c0_i32_0 : i32, i32
  }
  func.func @transform_2(%arg0: i32) -> (i32, i32) {
    %c0_i32 = arith.constant 0 : i32
    %c0_i32_0 = arith.constant 0 : i32
    %c0_i32_1 = arith.constant 0 : i32
    return %c0_i32, %c0_i32_0 : i32, i32
  }
  func.func @transform_3(%arg0: i32) -> (i32, i32) {
    %c0_i32 = arith.constant 0 : i32
    %c0_i32_0 = arith.constant 0 : i32
    %c0_i32_1 = arith.constant 0 : i32
    return %c0_i32, %c0_i32_0 : i32, i32
  }
  func.func @transform_4(%arg0: i32) -> (i32, i32) {
    %c0_i32 = arith.constant 0 : i32
    %c0_i32_0 = arith.constant 0 : i32
    %c0_i32_1 = arith.constant 0 : i32
    return %c0_i32, %c0_i32_0 : i32, i32
  }
  func.func @transform_5(%arg0: i32) -> (i32, i32) {
    %c0_i32 = arith.constant 0 : i32
    %c0_i32_0 = arith.constant 0 : i32
    return %arg0, %c0_i32 : i32, i32
  }
}

</mosaic_0001>

<llo_original>
// kernel: discriminator_forward.1
$region0: #{discriminator_forward.1}
  #allocation0 [shape = 'u32[]', space=smem, size = 0x4, offset = 0x4, fixed_abs, tag = 'smem constant byte address 0x4 - core index']
  #allocation1 [shape = 'u32[144,128]{1,0:T(1,128)}', space=vmem, size = 0x12000, scoped, tag = 'internal scratch']
  #allocation2 [shape = 'f32[1,1]{1,0:T(1,128)S(6)}', space=smem, size = 0x200, scoped, tag = 'scoped memory for discriminator_forward.1']
  %s0 = inlined_call_operand.hbm [shape: f32[13,784], index: 0, kind: input, shape index: {}]
  %s1 = inlined_call_operand.hbm [shape: bf16[784,128], index: 1, kind: input, shape index: {}]
  %s2 = inlined_call_operand.vmem [shape: f32[1,128], index: 2, kind: input, shape index: {}]
  %s3 = inlined_call_operand.vmem [shape: f32[1,128], index: 3, kind: input, shape index: {}]
  %s4 = inlined_call_operand.<no memory space> [shape: f32[1,1], index: 4, kind: input, shape index: {}]
  %s5 = inlined_call_operand.vmem [shape: f32[13,1], index: 5, kind: output, shape index: {}]
  %s6 = sld [smem:[#allocation0]]
  $region61: #{discriminator_forward.1} parent=0
    _
  %s8 = ssub.s32 1, %s6
  %s9 = scalar_select 0, %s8, %s6
  %10 = sst [smem:[#allocation2]] %s4
  $region1: #{discriminator_forward.1} parent=0
    #allocation3 [shape = 'u8[57344]{0}', space=vmem, size = 0xe000, scoped, tag = 'input window, operand 0']
    #allocation4 [shape = 's32[2]{0}', space=sflag, size = 0x8, scoped, tag = 'scoped memory for discriminator_forward.1']
    #allocation5 [shape = 'u8[200704]{0}', space=vmem, size = 0x31000, scoped, tag = 'input window, operand 1, single buffered']
    #allocation6 [shape = 's32[1]{0}', space=sflag, size = 0x4, scoped, tag = 'scoped memory for discriminator_forward.1']
    %11 = vsyncpa [#allocation4], 0
    %s12 = scalar_lea.sflag [#allocation4], 1
    %13 = vsyncpa %s12, 0
    %14 = vsyncpa [#allocation6], 0
    loop: start=0, step=1, limit=4
    $region2: #{discriminator_forward.1} parent=1 // loop_pre_header
      _
    $region3: #{discriminator_forward.1} parent=1 // loop_header
      %s16 = sphi 0, %s20
      %p17 = scmp.ge.s32.totalorder %s16, 4
      %s26 = sphi 0, %s28
      %s29 = sphi 0, %s26
      %s30 = sphi 0, %s29
      %s46 = sphi 0, %s30
      %s50 = sphi 0, %s50
      %s52 = sphi 0, %s50
      %s53 = sphi 0, %s52
      %s67 = sphi 0, %s53
      %s71 = sphi 0, %s71
      %s73 = sphi 0, %s71
      %s74 = sphi 0, %s73
      %s88 = sphi 0, %s74
      %s92 = sphi 0, %s92
      %s94 = sphi 0, %s92
      %s95 = sphi 0, %s94
      %s109 = sphi 0, %s95
      %s113 = sphi 0, %s113
      %s115 = sphi 0, %s113
      %s116 = sphi 0, %s115
      %s130 = sphi 0, %s116
      %s136 = sphi 0, %s138
      %s139 = sphi 0, %s136
      %s140 = sphi 0, %s139
      %s156 = sphi 0, %s140
    $region4: #{discriminator_forward.1} parent=1 // loop_header_branch
      %19 = sbr.rel (%p17) target = $region8
    $region5: #{discriminator_forward.1} parent=1 // loop_body
      %s21 = ssub.s32 %s16, 1
      %s22 = ssub.s32 %s16, 2
      %s23 = sadd.s32 %s16, 1
      %s24 = ssub.s32 %s16, %s23
      %p25 = scmp.eq.s32.totalorder %s24, 0
      %s27 = sadd.s32 %s26, 1
      %s28 = scalar_select %p25, %s26, %s27
      %p31 = pneg %p25
      %p32 = scmp.eq.s32.totalorder %s16, 1
      %p33 = por %p31, %p32
      %p34 = scmp.ne.s32.totalorder %s26, %s29
      %p35 = scmp.eq.s32.totalorder %s16, 0
      %p36 = por %p34, %p35
      %p37 = scmp.ne.s32.totalorder %s26, %s29
      %p38 = scmp.eq.s32.totalorder %s21, 1
      %p39 = por %p37, %p38
      %p40 = scmp.ne.s32.totalorder %s29, %s30
      %p41 = scmp.eq.s32.totalorder %s21, 0
      %p42 = por %p40, %p41
      %p43 = scmp.ne.s32.totalorder %s29, %s30
      %p44 = scmp.eq.s32.totalorder %s22, 1
      %p45 = por %p43, %p44
      %p47 = scmp.ne.s32.totalorder %s30, %s46
      %p48 = scmp.eq.s32.totalorder %s22, 0
      %p49 = por %p47, %p48
      %s51 = sadd.s32 %s50, 1
      %p54 = scmp.eq.s32.totalorder %s16, 1
      %p55 = scmp.ne.s32.totalorder %s50, %s52
      %p56 = scmp.eq.s32.totalorder %s16, 0
      %p57 = por %p55, %p56
      %p58 = scmp.ne.s32.totalorder %s50, %s52
      %p59 = scmp.eq.s32.totalorder %s21, 1
      %p60 = por %p58, %p59
      %p61 = scmp.ne.s32.totalorder %s52, %s53
      %p62 = scmp.eq.s32.totalorder %s21, 0
      %p63 = por %p61, %p62
      %p64 = scmp.ne.s32.totalorder %s52, %s53
      %p65 = scmp.eq.s32.totalorder %s22, 1
      %p66 = por %p64, %p65
      %p68 = scmp.ne.s32.totalorder %s53, %s67
      %p69 = scmp.eq.s32.totalorder %s22, 0
      %p70 = por %p68, %p69
      %s72 = sadd.s32 %s71, 1
      %p75 = scmp.eq.s32.totalorder %s16, 1
      %p76 = scmp.ne.s32.totalorder %s71, %s73
      %p77 = scmp.eq.s32.totalorder %s16, 0
      %p78 = por %p76, %p77
      %p79 = scmp.ne.s32.totalorder %s71, %s73
      %p80 = scmp.eq.s32.totalorder %s21, 1
      %p81 = por %p79, %p80
      %p82 = scmp.ne.s32.totalorder %s73, %s74
      %p83 = scmp.eq.s32.totalorder %s21, 0
      %p84 = por %p82, %p83
      %p85 = scmp.ne.s32.totalorder %s73, %s74
      %p86 = scmp.eq.s32.totalorder %s22, 1
      %p87 = por %p85, %p86
      %p89 = scmp.ne.s32.totalorder %s74, %s88
      %p90 = scmp.eq.s32.totalorder %s22, 0
      %p91 = por %p89, %p90
      %s93 = sadd.s32 %s92, 1
      %p96 = scmp.eq.s32.totalorder %s16, 1
      %p97 = scmp.ne.s32.totalorder %s92, %s94
      %p98 = scmp.eq.s32.totalorder %s16, 0
      %p99 = por %p97, %p98
      %p100 = scmp.ne.s32.totalorder %s92, %s94
      %p101 = scmp.eq.s32.totalorder %s21, 1
      %p102 = por %p100, %p101
      %p103 = scmp.ne.s32.totalorder %s94, %s95
      %p104 = scmp.eq.s32.totalorder %s21, 0
      %p105 = por %p103, %p104
      %p106 = scmp.ne.s32.totalorder %s94, %s95
      %p107 = scmp.eq.s32.totalorder %s22, 1
      %p108 = por %p106, %p107
      %p110 = scmp.ne.s32.totalorder %s95, %s109
      %p111 = scmp.eq.s32.totalorder %s22, 0
      %p112 = por %p110, %p111
      %s114 = sadd.s32 %s113, 1
      %p117 = scmp.eq.s32.totalorder %s16, 1
      %p118 = scmp.ne.s32.totalorder %s113, %s115
      %p119 = scmp.eq.s32.totalorder %s16, 0
      %p120 = por %p118, %p119
      %p121 = scmp.ne.s32.totalorder %s113, %s115
      %p122 = scmp.eq.s32.totalorder %s21, 1
      %p123 = por %p121, %p122
      %p124 = scmp.ne.s32.totalorder %s115, %s116
      %p125 = scmp.eq.s32.totalorder %s21, 0
      %p126 = por %p124, %p125
      %p127 = scmp.ne.s32.totalorder %s115, %s116
      %p128 = scmp.eq.s32.totalorder %s22, 1
      %p129 = por %p127, %p128
      %p131 = scmp.ne.s32.totalorder %s116, %s130
      %p132 = scmp.eq.s32.totalorder %s22, 0
      %p133 = por %p131, %p132
      %s134 = ssub.s32 %s16, %s23
      %p135 = scmp.eq.s32.totalorder %s134, 0
      %s137 = sadd.s32 %s136, 1
      %s138 = scalar_select %p135, %s136, %s137
      %p141 = pneg %p135
      %p142 = scmp.eq.s32.totalorder %s16, 1
      %p143 = por %p141, %p142
      %p144 = scmp.ne.s32.totalorder %s136, %s139
      %p145 = scmp.eq.s32.totalorder %s16, 0
      %p146 = por %p144, %p145
      %p147 = scmp.ne.s32.totalorder %s136, %s139
      %p148 = scmp.eq.s32.totalorder %s21, 1
      %p149 = por %p147, %p148
      %p150 = scmp.ne.s32.totalorder %s139, %s140
      %p151 = scmp.eq.s32.totalorder %s21, 0
      %p152 = por %p150, %p151
      %p153 = scmp.ne.s32.totalorder %s139, %s140
      %p154 = scmp.eq.s32.totalorder %s22, 1
      %p155 = por %p153, %p154
      %p157 = scmp.ne.s32.totalorder %s140, %s156
      %p158 = scmp.eq.s32.totalorder %s22, 0
      %p159 = por %p157, %p158
      %p160 = scmp.le.s32.totalorder 1, %s16
      %p161 = scmp.lt.s32.totalorder %s16, 3
      %p162 = pnand %p160, %p161
      %p163 = pneg %p162
      // Predicated region
      $region9: #{discriminator_forward.1} parent=5 // pred_check
        _
      $region10: #{discriminator_forward.1} parent=5 // pred_check_branch
        %165 = sbr.rel (%p162) target = $region12
      $region11: #{discriminator_forward.1} parent=5 // pred_region
        %s166 = ssub.s32 %s16, 1
        // Predicated region
        $region13: #{discriminator_forward.1} parent=11 // pred_check
          %p167 = pneg %p63
        $region14: #{discriminator_forward.1} parent=11 // pred_check_branch
          %169 = sbr.rel (%p167) target = $region16
        $region15: #{discriminator_forward.1} parent=11 // pred_region
          %s171 = ssub.s32 6272, 6272
          %172 = vsyncadd [#allocation6], %s171
          %s173 = sshll.u32 [#allocation5], 4
          %s174 = int_to_ptr.vmem [resolvable:$true] %s173
          %179 = dma.hbm_to_vmem [thread:$0]  %s1, 6272, %s174, [#allocation6], 64, 64, 4
        $region16: #{discriminator_forward.1} parent=11 // pred_fallthru
          _
        // Predicated region
        $region17: #{discriminator_forward.1} parent=11 // pred_check
          %p180 = pneg %p84
        $region18: #{discriminator_forward.1} parent=11 // pred_check_branch
          %182 = sbr.rel (%p180) target = $region20
        $region19: #{discriminator_forward.1} parent=11 // pred_region
          _
        $region20: #{discriminator_forward.1} parent=11 // pred_fallthru
          _
        // Predicated region
        $region21: #{discriminator_forward.1} parent=11 // pred_check
          %p183 = pneg %p105
        $region22: #{discriminator_forward.1} parent=11 // pred_check_branch
          %185 = sbr.rel (%p183) target = $region24
        $region23: #{discriminator_forward.1} parent=11 // pred_region
          _
        $region24: #{discriminator_forward.1} parent=11 // pred_fallthru
          _
        // Predicated region
        $region25: #{discriminator_forward.1} parent=11 // pred_check
          %p186 = pneg %p126
        $region26: #{discriminator_forward.1} parent=11 // pred_check_branch
          %188 = sbr.rel (%p186) target = $region28
        $region27: #{discriminator_forward.1} parent=11 // pred_region
          _
        $region28: #{discriminator_forward.1} parent=11 // pred_fallthru
          _
      $region12: #{discriminator_forward.1} parent=5 // pred_fallthru
        _
      %p189 = scmp.lt.s32.totalorder %s16, 2
      // Predicated region
      $region29: #{discriminator_forward.1} parent=5 // pred_check
        %p190 = pneg %p189
      $region30: #{discriminator_forward.1} parent=5 // pred_check_branch
        %192 = sbr.rel (%p190) target = $region32
      $region31: #{discriminator_forward.1} parent=5 // pred_region
        // Predicated region
        $region33: #{discriminator_forward.1} parent=31 // pred_check
          %p193 = pneg %p36
        $region34: #{discriminator_forward.1} parent=31 // pred_check_branch
          %195 = sbr.rel (%p193) target = $region36
        $region35: #{discriminator_forward.1} parent=31 // pred_region
          %s196 = sand.u32 %s26, 1
          %s197 = scalar_lea.sflag [#allocation4], %s196
          %s198 = sand.u32 %s26, 1
          %s199 = smul.addr %s198, 56
          %s200 = scalar_lea.vmem [#allocation3], %s199
          %s202 = ssub.s32 896, 896
          %203 = vsyncadd %s197, %s202
          %s204 = smul.addr %s16, 7
          %s205 = smul.addr %s204, 128
          %s206 = scalar_lea.hbm %s0, %s205
          %s208 = sshll.u32 %s200, 4
          %s209 = int_to_ptr.vmem [resolvable:$true] %s208
          %211 = dma.hbm_to_vmem [thread:$0]  %s206, 896, %s209, %s197
        $region36: #{discriminator_forward.1} parent=31 // pred_fallthru
          _
      $region32: #{discriminator_forward.1} parent=5 // pred_fallthru
        _
      %p212 = scmp.le.s32.totalorder 1, %s16
      %p213 = scmp.lt.s32.totalorder %s16, 3
      %p214 = pnand %p212, %p213
      %p215 = pneg %p214
      // Predicated region
      $region37: #{discriminator_forward.1} parent=5 // pred_check
        _
      $region38: #{discriminator_forward.1} parent=5 // pred_check_branch
        %217 = sbr.rel (%p214) target = $region40
      $region39: #{discriminator_forward.1} parent=5 // pred_region
        %s218 = ssub.s32 %s16, 1
        %s219 = sand.u32 %s29, 1
        %s220 = scalar_lea.sflag [#allocation4], %s219
        %s221 = sand.u32 %s29, 1
        %s222 = smul.addr %s221, 56
        %s223 = scalar_lea.vmem [#allocation3], %s222
        // Predicated region
        $region41: #{discriminator_forward.1} parent=39 // pred_check
          %p224 = pneg %p42
        $region42: #{discriminator_forward.1} parent=39 // pred_check_branch
          %226 = sbr.rel (%p224) target = $region44
        $region43: #{discriminator_forward.1} parent=39 // pred_region
          %227 = dma.done %s220, 896
        $region44: #{discriminator_forward.1} parent=39 // pred_fallthru
          _
        // Predicated region
        $region45: #{discriminator_forward.1} parent=39 // pred_check
          %p228 = pneg %p63
        $region46: #{discriminator_forward.1} parent=39 // pred_check_branch
          %230 = sbr.rel (%p228) target = $region48
        $region47: #{discriminator_forward.1} parent=39 // pred_region
          %231 = dma.done [#allocation6], 6272
        $region48: #{discriminator_forward.1} parent=39 // pred_fallthru
          _
        %s232 = sand.u32 %s29, 1
        %s233 = scalar_lea.sflag [#allocation4], %s232
        %s234 = sand.u32 %s29, 1
        %s235 = smul.addr %s234, 56
        %s236 = scalar_lea.vmem [#allocation3], %s235
        %p237 = pneg %p42
        %p238 = pneg %p39
        %p239 = pneg %p63
        %p240 = pneg %p60
        %p241 = pneg %p84
        %p242 = pneg %p81
        %p243 = pneg %p105
        %p244 = pneg %p102
        %p245 = pneg %p126
        %p246 = pneg %p123
        %p247 = pneg %p152
        %p248 = pneg %p149
        %p249 = scmp.lt.s32.totalorder %s21, 1
        %s250 = scalar_select %p249, %s21, 1
        %s251 = smul.addr %s250, 8
        %s252 = scalar_lea.vmem %s5, %s251
        %p253 = scmp.lt.s32.totalorder %s21, 1
        %s254 = scalar_select %p253, %s21, 1
        %s255 = smul.addr %s254, 8
        %s256 = scalar_lea.vmem %s5, %s255
        %v258 = vld [vmem:[%s223] sm:$0xff]
        %v259 = vld [vmem:[%s223 + $0x8] sm:$0xff]
        %v260 = vld [vmem:[%s223 + $0x10] sm:$0xff]
        %v261 = vld [vmem:[%s223 + $0x18] sm:$0xff]
        %v262 = vld [vmem:[%s223 + $0x20] sm:$0xff]
        %v263 = vld [vmem:[%s223 + $0x28] sm:$0xff]
        %v264 = vld [vmem:[%s223 + $0x30] sm:$0xff]
        %v265 = vpack.c.bf16 %v258, %v258
        %v266 = vpack.c.bf16 %v259, %v259
        %v267 = vpack.c.bf16 %v260, %v260
        %v268 = vpack.c.bf16 %v261, %v261
        %v269 = vpack.c.bf16 %v262, %v262
        %v270 = vpack.c.bf16 %v263, %v263
        %v271 = vpack.c.bf16 %v264, %v264
        %v272 = vld [vmem:[#allocation5] sm:$0xf]
        %v273 = vld [vmem:[#allocation5 + $0x4] sm:$0xf]
        %v274 = vld [vmem:[#allocation5 + $0x8] sm:$0xf]
        %v275 = vld [vmem:[#allocation5 + $0xc] sm:$0xf]
        %v276 = vld [vmem:[#allocation5 + $0x10] sm:$0xf]
        %v277 = vld [vmem:[#allocation5 + $0x14] sm:$0xf]
        %v278 = vld [vmem:[#allocation5 + $0x18] sm:$0xf]
        %v279 = vld [vmem:[#allocation5 + $0x1c] sm:$0xf]
        %v280 = vld [vmem:[#allocation5 + $0x20] sm:$0xf]
        %v281 = vld [vmem:[#allocation5 + $0x24] sm:$0xf]
        %v282 = vld [vmem:[#allocation5 + $0x28] sm:$0xf]
        %v283 = vld [vmem:[#allocation5 + $0x2c] sm:$0xf]
        %v284 = vld [vmem:[#allocation5 + $0x30] sm:$0xf]
        %v285 = vld [vmem:[#allocation5 + $0x34] sm:$0xf]
        %v286 = vld [vmem:[#allocation5 + $0x38] sm:$0xf]
        %v287 = vld [vmem:[#allocation5 + $0x3c] sm:$0xf]
        %v288 = vld [vmem:[#allocation5 + $0x40] sm:$0xf]
        %v289 = vld [vmem:[#allocation5 + $0x44] sm:$0xf]
        %v290 = vld [vmem:[#allocation5 + $0x48] sm:$0xf]
        %v291 = vld [vmem:[#allocation5 + $0x4c] sm:$0xf]
        %v292 = vld [vmem:[#allocation5 + $0x50] sm:$0xf]
        %v293 = vld [vmem:[#allocation5 + $0x54] sm:$0xf]
        %v294 = vld [vmem:[#allocation5 + $0x58] sm:$0xf]
        %v295 = vld [vmem:[#allocation5 + $0x5c] sm:$0xf]
        %v296 = vld [vmem:[#allocation5 + $0x60] sm:$0xf]
        %v297 = vld [vmem:[#allocation5 + $0x64] sm:$0xf]
        %v298 = vld [vmem:[#allocation5 + $0x68] sm:$0xf]
        %v299 = vld [vmem:[#allocation5 + $0x6c] sm:$0xf]
        %v300 = vld [vmem:[#allocation5 + $0x70] sm:$0xf]
        %v301 = vld [vmem:[#allocation5 + $0x74] sm:$0xf]
        %v302 = vld [vmem:[#allocation5 + $0x78] sm:$0xf]
        %v303 = vld [vmem:[#allocation5 + $0x7c] sm:$0xf]
        %v304 = vld [vmem:[#allocation5 + $0x80] sm:$0xf]
        %v305 = vld [vmem:[#allocation5 + $0x84] sm:$0xf]
        %v306 = vld [vmem:[#allocation5 + $0x88] sm:$0xf]
        %v307 = vld [vmem:[#allocation5 + $0x8c] sm:$0xf]
        %v308 = vld [vmem:[#allocation5 + $0x90] sm:$0xf]
        %v309 = vld [vmem:[#allocation5 + $0x94] sm:$0xf]
        %v310 = vld [vmem:[#allocation5 + $0x98] sm:$0xf]
        %v311 = vld [vmem:[#allocation5 + $0x9c] sm:$0xf]
        %v312 = vld [vmem:[#allocation5 + $0xa0] sm:$0xf]
        %v313 = vld [vmem:[#allocation5 + $0xa4] sm:$0xf]
        %v314 = vld [vmem:[#allocation5 + $0xa8] sm:$0xf]
        %v315 = vld [vmem:[#allocation5 + $0xac] sm:$0xf]
        %v316 = vld [vmem:[#allocation5 + $0xb0] sm:$0xf]
        %v317 = vld [vmem:[#allocation5 + $0xb4] sm:$0xf]
        %v318 = vld [vmem:[#allocation5 + $0xb8] sm:$0xf]
        %v319 = vld [vmem:[#allocation5 + $0xbc] sm:$0xf]
        %v320 = vld [vmem:[#allocation5 + $0xc0] sm:$0xf]
        %v321 = vld [vmem:[#allocation5 + $0xc4] sm:$0xf]
        %v322 = vld [vmem:[#allocation5 + $0xc8] sm:$0xf]
        %v323 = vld [vmem:[#allocation5 + $0xcc] sm:$0xf]
        %v324 = vld [vmem:[#allocation5 + $0xd0] sm:$0xf]
        %v325 = vld [vmem:[#allocation5 + $0xd4] sm:$0xf]
        %v326 = vld [vmem:[#allocation5 + $0xd8] sm:$0xf]
        %v327 = vld [vmem:[#allocation5 + $0xdc] sm:$0xf]
        %v328 = vld [vmem:[#allocation5 + $0xe0] sm:$0xf]
        %v329 = vld [vmem:[#allocation5 + $0xe4] sm:$0xf]
        %v330 = vld [vmem:[#allocation5 + $0xe8] sm:$0xf]
        %v331 = vld [vmem:[#allocation5 + $0xec] sm:$0xf]
        %v332 = vld [vmem:[#allocation5 + $0xf0] sm:$0xf]
        %v333 = vld [vmem:[#allocation5 + $0xf4] sm:$0xf]
        %v334 = vld [vmem:[#allocation5 + $0xf8] sm:$0xf]
        %v335 = vld [vmem:[#allocation5 + $0xfc] sm:$0xf]
        %v336 = vld [vmem:[#allocation5 + $0x100] sm:$0xf]
        %v337 = vld [vmem:[#allocation5 + $0x104] sm:$0xf]
        %v338 = vld [vmem:[#allocation5 + $0x108] sm:$0xf]
        %v339 = vld [vmem:[#allocation5 + $0x10c] sm:$0xf]
        %v340 = vld [vmem:[#allocation5 + $0x110] sm:$0xf]
        %v341 = vld [vmem:[#allocation5 + $0x114] sm:$0xf]
        %v342 = vld [vmem:[#allocation5 + $0x118] sm:$0xf]
        %v343 = vld [vmem:[#allocation5 + $0x11c] sm:$0xf]
        %v344 = vld [vmem:[#allocation5 + $0x120] sm:$0xf]
        %v345 = vld [vmem:[#allocation5 + $0x124] sm:$0xf]
        %v346 = vld [vmem:[#allocation5 + $0x128] sm:$0xf]
        %v347 = vld [vmem:[#allocation5 + $0x12c] sm:$0xf]
        %v348 = vld [vmem:[#allocation5 + $0x130] sm:$0xf]
        %v349 = vld [vmem:[#allocation5 + $0x134] sm:$0xf]
        %v350 = vld [vmem:[#allocation5 + $0x138] sm:$0xf]
        %v351 = vld [vmem:[#allocation5 + $0x13c] sm:$0xf]
        %v352 = vld [vmem:[#allocation5 + $0x140] sm:$0xf]
        %v353 = vld [vmem:[#allocation5 + $0x144] sm:$0xf]
        %v354 = vld [vmem:[#allocation5 + $0x148] sm:$0xf]
        %v355 = vld [vmem:[#allocation5 + $0x14c] sm:$0xf]
        %v356 = vld [vmem:[#allocation5 + $0x150] sm:$0xf]
        %v357 = vld [vmem:[#allocation5 + $0x154] sm:$0xf]
        %v358 = vld [vmem:[#allocation5 + $0x158] sm:$0xf]
        %v359 = vld [vmem:[#allocation5 + $0x15c] sm:$0xf]
        %v360 = vld [vmem:[#allocation5 + $0x160] sm:$0xf]
        %v361 = vld [vmem:[#allocation5 + $0x164] sm:$0xf]
        %v362 = vld [vmem:[#allocation5 + $0x168] sm:$0xf]
        %v363 = vld [vmem:[#allocation5 + $0x16c] sm:$0xf]
        %v364 = vld [vmem:[#allocation5 + $0x170] sm:$0xf]
        %v365 = vld [vmem:[#allocation5 + $0x174] sm:$0xf]
        %v366 = vld [vmem:[#allocation5 + $0x178] sm:$0xf]
        %v367 = vld [vmem:[#allocation5 + $0x17c] sm:$0xf]
        %v368 = vld [vmem:[#allocation5 + $0x180] sm:$0xf]
        %v369 = vld [vmem:[#allocation5 + $0x184] sm:$0xf]
        %v370 = vld [vmem:[%s2] sm:$0x1]
        %v372 = vlaneseq
        %v373 = vshrl.u32 %v372, 7
        %v374 = vsub.s32 0, %v373
        %v375 = vrot.slane %v370, %v374
        %v475 = vunpack.c.l.b16 %v272
        %v476 = vunpack.c.l.b16 %v273
        %v477 = vunpack.c.l.b16 %v274
        %v478 = vunpack.c.l.b16 %v275
        %v479 = vunpack.c.l.b16 %v276
        %v480 = vunpack.c.l.b16 %v277
        %v481 = vunpack.c.l.b16 %v278
        %v482 = vunpack.c.l.b16 %v279
        %v483 = vunpack.c.l.b16 %v280
        %v484 = vunpack.c.l.b16 %v281
        %v485 = vunpack.c.l.b16 %v282
        %v486 = vunpack.c.l.b16 %v283
        %v487 = vunpack.c.l.b16 %v284
        %v488 = vunpack.c.l.b16 %v285
        %v489 = vunpack.c.l.b16 %v286
        %v490 = vunpack.c.l.b16 %v287
        %v491 = vunpack.c.l.b16 %v288
        %v492 = vunpack.c.l.b16 %v289
        %v493 = vunpack.c.l.b16 %v290
        %v494 = vunpack.c.l.b16 %v291
        %v495 = vunpack.c.l.b16 %v292
        %v496 = vunpack.c.l.b16 %v293
        %v497 = vunpack.c.l.b16 %v294
        %v498 = vunpack.c.l.b16 %v295
        %v499 = vunpack.c.l.b16 %v296
        %v500 = vunpack.c.l.b16 %v297
        %v501 = vunpack.c.l.b16 %v298
        %v502 = vunpack.c.l.b16 %v299
        %v503 = vunpack.c.l.b16 %v300
        %v504 = vunpack.c.l.b16 %v301
        %v505 = vunpack.c.l.b16 %v302
        %v506 = vunpack.c.l.b16 %v303
        %v507 = vunpack.c.l.b16 %v304
        %v508 = vunpack.c.l.b16 %v305
        %v509 = vunpack.c.l.b16 %v306
        %v510 = vunpack.c.l.b16 %v307
        %v511 = vunpack.c.l.b16 %v308
        %v512 = vunpack.c.l.b16 %v309
        %v513 = vunpack.c.l.b16 %v310
        %v514 = vunpack.c.l.b16 %v311
        %v515 = vunpack.c.l.b16 %v312
        %v516 = vunpack.c.l.b16 %v313
        %v517 = vunpack.c.l.b16 %v314
        %v518 = vunpack.c.l.b16 %v315
        %v519 = vunpack.c.l.b16 %v316
        %v520 = vunpack.c.l.b16 %v317
        %v521 = vunpack.c.l.b16 %v318
        %v522 = vunpack.c.l.b16 %v319
        %v523 = vunpack.c.l.b16 %v320
        %v524 = vunpack.c.l.b16 %v321
        %v525 = vunpack.c.l.b16 %v322
        %v526 = vunpack.c.l.b16 %v323
        %v527 = vunpack.c.l.b16 %v324
        %v528 = vunpack.c.l.b16 %v325
        %v529 = vunpack.c.l.b16 %v326
        %v530 = vunpack.c.l.b16 %v327
        %v531 = vunpack.c.l.b16 %v328
        %v532 = vunpack.c.l.b16 %v329
        %v533 = vunpack.c.l.b16 %v330
        %v534 = vunpack.c.l.b16 %v331
        %v535 = vunpack.c.l.b16 %v332
        %v536 = vunpack.c.l.b16 %v333
        %v537 = vunpack.c.l.b16 %v334
        %v538 = vunpack.c.l.b16 %v335
        %v539 = vunpack.c.l.b16 %v336
        %v540 = vunpack.c.l.b16 %v337
        %v541 = vunpack.c.l.b16 %v338
        %v542 = vunpack.c.l.b16 %v339
        %v543 = vunpack.c.l.b16 %v340
        %v544 = vunpack.c.l.b16 %v341
        %v545 = vunpack.c.l.b16 %v342
        %v546 = vunpack.c.l.b16 %v343
        %v547 = vunpack.c.l.b16 %v344
        %v548 = vunpack.c.l.b16 %v345
        %v549 = vunpack.c.l.b16 %v346
        %v550 = vunpack.c.l.b16 %v347
        %v551 = vunpack.c.l.b16 %v348
        %v552 = vunpack.c.l.b16 %v349
        %v553 = vunpack.c.l.b16 %v350
        %v554 = vunpack.c.l.b16 %v351
        %v555 = vunpack.c.l.b16 %v352
        %v556 = vunpack.c.l.b16 %v353
        %v557 = vunpack.c.l.b16 %v354
        %v558 = vunpack.c.l.b16 %v355
        %v559 = vunpack.c.l.b16 %v356
        %v560 = vunpack.c.l.b16 %v357
        %v561 = vunpack.c.l.b16 %v358
        %v562 = vunpack.c.l.b16 %v359
        %v563 = vunpack.c.l.b16 %v360
        %v564 = vunpack.c.l.b16 %v361
        %v565 = vunpack.c.l.b16 %v362
        %v566 = vunpack.c.l.b16 %v363
        %v567 = vunpack.c.l.b16 %v364
        %v568 = vunpack.c.l.b16 %v365
        %v569 = vunpack.c.l.b16 %v366
        %v570 = vunpack.c.l.b16 %v367
        %v571 = vunpack.c.l.b16 %v368
        %v572 = vunpack.c.l.b16 %v369
        %v573 = vpack.c.b16 %v476, %v475
        %v574 = vpack.c.b16 %v478, %v477
        %v575 = vpack.c.b16 %v480, %v479
        %v576 = vpack.c.b16 %v482, %v481
        %v577 = vpack.c.b16 %v484, %v483
        %v578 = vpack.c.b16 %v486, %v485
        %v579 = vpack.c.b16 %v488, %v487
        %v580 = vpack.c.b16 %v490, %v489
        %v581 = vpack.c.b16 %v492, %v491
        %v582 = vpack.c.b16 %v494, %v493
        %v583 = vpack.c.b16 %v496, %v495
        %v584 = vpack.c.b16 %v498, %v497
        %v585 = vpack.c.b16 %v500, %v499
        %v586 = vpack.c.b16 %v502, %v501
        %v587 = vpack.c.b16 %v504, %v503
        %v588 = vpack.c.b16 %v506, %v505
        %v589 = vpack.c.b16 %v508, %v507
        %v590 = vpack.c.b16 %v510, %v509
        %v591 = vpack.c.b16 %v512, %v511
        %v592 = vpack.c.b16 %v514, %v513
        %v593 = vpack.c.b16 %v516, %v515
        %v594 = vpack.c.b16 %v518, %v517
        %v595 = vpack.c.b16 %v520, %v519
        %v596 = vpack.c.b16 %v522, %v521
        %v597 = vpack.c.b16 %v524, %v523
        %v598 = vpack.c.b16 %v526, %v525
        %v599 = vpack.c.b16 %v528, %v527
        %v600 = vpack.c.b16 %v530, %v529
        %v601 = vpack.c.b16 %v532, %v531
        %v602 = vpack.c.b16 %v534, %v533
        %v603 = vpack.c.b16 %v536, %v535
        %v604 = vpack.c.b16 %v538, %v537
        %v605 = vpack.c.b16 %v540, %v539
        %v606 = vpack.c.b16 %v542, %v541
        %v607 = vpack.c.b16 %v544, %v543
        %v608 = vpack.c.b16 %v546, %v545
        %v609 = vpack.c.b16 %v548, %v547
        %v610 = vpack.c.b16 %v550, %v549
        %v611 = vpack.c.b16 %v552, %v551
        %v612 = vpack.c.b16 %v554, %v553
        %v613 = vpack.c.b16 %v556, %v555
        %v614 = vpack.c.b16 %v558, %v557
        %v615 = vpack.c.b16 %v560, %v559
        %v616 = vpack.c.b16 %v562, %v561
        %v617 = vpack.c.b16 %v564, %v563
        %v618 = vpack.c.b16 %v566, %v565
        %v619 = vpack.c.b16 %v568, %v567
        %v620 = vpack.c.b16 %v570, %v569
        %v621 = vpack.c.b16 %v572, %v571
        %vm671 = vcmask 130048
        %v673 = vsel %vm671, %v271, 0
        %675 = vmatprep.subr.bf16.mxu0 0
        %676 = vmatpush1.bf16.msra.mxu0 %v573
        %677 = vmatprep.subr.bf16.mxu0 0
        %678 = vmatpush1.bf16.msra.mxu0 %v574
        %679 = vmatprep.subr.bf16.mxu0 0
        %680 = vmatpush1.bf16.msra.mxu0 %v575
        %681 = vmatprep.subr.bf16.mxu0 0
        %682 = vmatpush1.bf16.msra.mxu0 %v576
        %683 = vmatprep.subr.bf16.mxu0 0
        %684 = vmatpush1.bf16.msra.mxu0 %v577
        %685 = vmatprep.subr.bf16.mxu0 0
        %686 = vmatpush1.bf16.msra.mxu0 %v578
        %687 = vmatprep.subr.bf16.mxu0 0
        %688 = vmatpush1.bf16.msra.mxu0 %v579
        %689 = vmatprep.subr.bf16.mxu0 0
        %690 = vmatpush1.bf16.msra.mxu0 %v580
        %691 = vmatprep.subr.bf16.mxu0 0
        %692 = vmatpush1.bf16.msra.mxu0 %v581
        %693 = vmatprep.subr.bf16.mxu0 0
        %694 = vmatpush1.bf16.msra.mxu0 %v582
        %695 = vmatprep.subr.bf16.mxu0 0
        %696 = vmatpush1.bf16.msra.mxu0 %v583
        %697 = vmatprep.subr.bf16.mxu0 0
        %698 = vmatpush1.bf16.msra.mxu0 %v584
        %699 = vmatprep.subr.bf16.mxu0 0
        %700 = vmatpush1.bf16.msra.mxu0 %v585
        %701 = vmatprep.subr.bf16.mxu0 0
        %702 = vmatpush1.bf16.msra.mxu0 %v586
        %703 = vmatprep.subr.bf16.mxu0 0
        %704 = vmatpush1.bf16.msra.mxu0 %v587
        %705 = vmatprep.subr.bf16.mxu0 0
        %706 = vmatpush1.bf16.msra.mxu0 %v588
        %707 = vmatprep.mubr.bf16.mxu0 %v266
        %708 = vmatmul.mubr.bf16.gmra.mrb[0].mxu0 %v265
        %v709 = vpop.f32.mrb[0].mxu0
        %v710 = vadd.f32 %v375, %v709
        %v711 = vpop.f32.mrb[0].mxu0
        %v712 = vpop.f32.mrb[0].mxu0
        %v713 = vpop.f32.mrb[0].mxu0
        %714 = vdwg.mxu0
        %715 = vmatprep.subr.bf16.mxu0 0
        %716 = vmatpush1.bf16.msra.mxu0 %v589
        %717 = vmatprep.subr.bf16.mxu0 0
        %718 = vmatpush1.bf16.msra.mxu0 %v590
        %719 = vmatprep.subr.bf16.mxu0 0
        %720 = vmatpush1.bf16.msra.mxu0 %v591
        %721 = vmatprep.subr.bf16.mxu0 0
        %722 = vmatpush1.bf16.msra.mxu0 %v592
        %723 = vmatprep.subr.bf16.mxu0 0
        %724 = vmatpush1.bf16.msra.mxu0 %v593
        %725 = vmatprep.subr.bf16.mxu0 0
        %726 = vmatpush1.bf16.msra.mxu0 %v594
        %727 = vmatprep.subr.bf16.mxu0 0
        %728 = vmatpush1.bf16.msra.mxu0 %v595
        %729 = vmatprep.subr.bf16.mxu0 0
        %730 = vmatpush1.bf16.msra.mxu0 %v596
        %731 = vmatprep.subr.bf16.mxu0 0
        %732 = vmatpush1.bf16.msra.mxu0 %v597
        %733 = vmatprep.subr.bf16.mxu0 0
        %734 = vmatpush1.bf16.msra.mxu0 %v598
        %735 = vmatprep.subr.bf16.mxu0 0
        %736 = vmatpush1.bf16.msra.mxu0 %v599
        %737 = vmatprep.subr.bf16.mxu0 0
        %738 = vmatpush1.bf16.msra.mxu0 %v600
        %739 = vmatprep.subr.bf16.mxu0 0
        %740 = vmatpush1.bf16.msra.mxu0 %v601
        %741 = vmatprep.subr.bf16.mxu0 0
        %742 = vmatpush1.bf16.msra.mxu0 %v602
        %743 = vmatprep.subr.bf16.mxu0 0
        %744 = vmatpush1.bf16.msra.mxu0 %v603
        %745 = vmatprep.subr.bf16.mxu0 0
        %746 = vmatpush1.bf16.msra.mxu0 %v604
        %747 = vmatprep.mubr.bf16.mxu0 %v268
        %748 = vmatmul.mubr.bf16.gmra.mrb[0].mxu0 %v267
        %v749 = vpop.f32.mrb[0].mxu0
        %v750 = vadd.f32 %v710, %v749
        %v751 = vpop.f32.mrb[0].mxu0
        %v752 = vpop.f32.mrb[0].mxu0
        %v753 = vpop.f32.mrb[0].mxu0
        %754 = vdwg.mxu0
        %755 = vmatprep.subr.bf16.mxu0 0
        %756 = vmatpush1.bf16.msra.mxu0 %v605
        %757 = vmatprep.subr.bf16.mxu0 0
        %758 = vmatpush1.bf16.msra.mxu0 %v606
        %759 = vmatprep.subr.bf16.mxu0 0
        %760 = vmatpush1.bf16.msra.mxu0 %v607
        %761 = vmatprep.subr.bf16.mxu0 0
        %762 = vmatpush1.bf16.msra.mxu0 %v608
        %763 = vmatprep.subr.bf16.mxu0 0
        %764 = vmatpush1.bf16.msra.mxu0 %v609
        %765 = vmatprep.subr.bf16.mxu0 0
        %766 = vmatpush1.bf16.msra.mxu0 %v610
        %767 = vmatprep.subr.bf16.mxu0 0
        %768 = vmatpush1.bf16.msra.mxu0 %v611
        %769 = vmatprep.subr.bf16.mxu0 0
        %770 = vmatpush1.bf16.msra.mxu0 %v612
        %771 = vmatprep.subr.bf16.mxu0 0
        %772 = vmatpush1.bf16.msra.mxu0 %v613
        %773 = vmatprep.subr.bf16.mxu0 0
        %774 = vmatpush1.bf16.msra.mxu0 %v614
        %775 = vmatprep.subr.bf16.mxu0 0
        %776 = vmatpush1.bf16.msra.mxu0 %v615
        %777 = vmatprep.subr.bf16.mxu0 0
        %778 = vmatpush1.bf16.msra.mxu0 %v616
        %779 = vmatprep.subr.bf16.mxu0 0
        %780 = vmatpush1.bf16.msra.mxu0 %v617
        %781 = vmatprep.subr.bf16.mxu0 0
        %782 = vmatpush1.bf16.msra.mxu0 %v618
        %783 = vmatprep.subr.bf16.mxu0 0
        %784 = vmatpush1.bf16.msra.mxu0 %v619
        %785 = vmatprep.subr.bf16.mxu0 0
        %786 = vmatpush1.bf16.msra.mxu0 %v620
        %787 = vmatprep.mubr.bf16.mxu0 %v270
        %788 = vmatmul.mubr.bf16.gmra.mrb[0].mxu0 %v269
        %v789 = vpop.f32.mrb[0].mxu0
        %v790 = vadd.f32 %v750, %v789
        %v791 = vpop.f32.mrb[0].mxu0
        %v792 = vpop.f32.mrb[0].mxu0
        %v793 = vpop.f32.mrb[0].mxu0
        %794 = vdwg.mxu0
        %795 = vmatprep.subr.bf16.mxu0 0
        %796 = vmatpush1.bf16.msra.mxu0 %v621
        %797 = vmatprep.subr.bf16.mxu0 0
        %798 = vmatpush1.bf16.msra.mxu0 0
        %799 = vmatprep.subr.bf16.mxu0 0
        %800 = vmatpush1.bf16.msra.mxu0 0
        %801 = vmatprep.subr.bf16.mxu0 0
        %802 = vmatpush1.bf16.msra.mxu0 0
        %803 = vmatprep.subr.bf16.mxu0 0
        %804 = vmatpush1.bf16.msra.mxu0 0
        %805 = vmatprep.subr.bf16.mxu0 0
        %806 = vmatpush1.bf16.msra.mxu0 0
        %807 = vmatprep.subr.bf16.mxu0 0
        %808 = vmatpush1.bf16.msra.mxu0 0
        %809 = vmatprep.subr.bf16.mxu0 0
        %810 = vmatpush1.bf16.msra.mxu0 0
        %811 = vmatprep.subr.bf16.mxu0 0
        %812 = vmatpush1.bf16.msra.mxu0 0
        %813 = vmatprep.subr.bf16.mxu0 0
        %814 = vmatpush1.bf16.msra.mxu0 0
        %815 = vmatprep.subr.bf16.mxu0 0
        %816 = vmatpush1.bf16.msra.mxu0 0
        %817 = vmatprep.subr.bf16.mxu0 0
        %818 = vmatpush1.bf16.msra.mxu0 0
        %819 = vmatprep.subr.bf16.mxu0 0
        %820 = vmatpush1.bf16.msra.mxu0 0
        %821 = vmatprep.subr.bf16.mxu0 0
        %822 = vmatpush1.bf16.msra.mxu0 0
        %823 = vmatprep.subr.bf16.mxu0 0
        %824 = vmatpush1.bf16.msra.mxu0 0
        %825 = vmatprep.subr.bf16.mxu0 0
        %826 = vmatpush1.bf16.msra.mxu0 0
        %827 = vmatprep.mubr.bf16.mxu0 0
        %828 = vmatmul.mubr.bf16.gmra.mrb[0].mxu0 %v673
        %v829 = vpop.f32.mrb[0].mxu0
        %v830 = vadd.f32 %v790, %v829
        %v831 = vpop.f32.mrb[0].mxu0
        %v832 = vpop.f32.mrb[0].mxu0
        %v833 = vpop.f32.mrb[0].mxu0
        %834 = vdwg.mxu0
        %vm835 = vcmp.ge.f32.partialorder %v830, 0.0
        %v836 = vmul.f32 %v830, 0.2
        %v837 = vsel %vm835, %v830, %v836
        %v838 = vld [vmem:[%s3] sm:$0x1]
        %v840 = vlaneseq
        %v841 = vshrl.u32 %v840, 7
        %v842 = vsub.s32 0, %v841
        %v843 = vrot.slane %v838, %v842
        %v845 = vmul.f32 %v837, %v843
        %846 = vadd.xlane.f32.xlu0 %v845
        %v847 = vpop.xlane.xlu0 %846
        %s848 = sld [smem:[#allocation2]]
        %v849 = vstv %s848
        %v850 = vadd.f32 %v847, %v849
        %v851 = vand.u32 2147483647, %v850
        %v852 = vsub.f32 0.0, %v851
        %v853 = vmul.f32 %v852, 1.442695
        %v854 = vpow.pop %v853
        %v855 = vadd.f32 %v854, 1.0
        %v856 = vrcp.pop %v855
        %v857 = vmul.f32 1.0, %v856
        %vm858 = vcmp.ge.f32.partialorder %v850, 0.0
        %v859 = vmul.f32 %v854, %v857
        %v860 = vsel %vm858, %v857, %v859
        %vm861 = vcmask 7168
        %862 = vst.msk [vmem:[%s256] sm:$0xff] %vm861, %v860
        %p863 = scmp.lt.s32.totalorder %s21, 1
        %s864 = scalar_select %p863, %s21, 1
        %s865 = smul.addr %s864, 8
        %s866 = scalar_lea.vmem %s5, %s865
        // Predicated region
        $region49: #{discriminator_forward.1} parent=39 // pred_check
          %p867 = pneg %p149
        $region50: #{discriminator_forward.1} parent=39 // pred_check_branch
          %869 = sbr.rel (%p867) target = $region52
        $region51: #{discriminator_forward.1} parent=39 // pred_region
          _
        $region52: #{discriminator_forward.1} parent=39 // pred_fallthru
          _
      $region40: #{discriminator_forward.1} parent=5 // pred_fallthru
        _
      %p870 = scmp.le.s32.totalorder 2, %s16
      // Predicated region
      $region53: #{discriminator_forward.1} parent=5 // pred_check
        %p871 = pneg %p870
      $region54: #{discriminator_forward.1} parent=5 // pred_check_branch
        %873 = sbr.rel (%p871) target = $region56
      $region55: #{discriminator_forward.1} parent=5 // pred_region
        %s874 = ssub.s32 %s16, 2
        // Predicated region
        $region57: #{discriminator_forward.1} parent=55 // pred_check
          %p875 = pneg %p155
        $region58: #{discriminator_forward.1} parent=55 // pred_check_branch
          %877 = sbr.rel (%p875) target = $region60
        $region59: #{discriminator_forward.1} parent=55 // pred_region
          %p878 = scmp.lt.s32.totalorder %s22, 1
          %s879 = scalar_select %p878, %s22, 1
          %s880 = smul.addr %s879, 8
          %s881 = scalar_lea.vmem %s5, %s880
        $region60: #{discriminator_forward.1} parent=55 // pred_fallthru
          _
      $region56: #{discriminator_forward.1} parent=5 // pred_fallthru
        _
    $region6: #{discriminator_forward.1} parent=1 // loop_footer
      %s20 = sadd.s32 1, %s16
    $region7: #{discriminator_forward.1} parent=1 // loop_footer_branch
      %15 = sbr.rel target = $region3
    $region8: #{discriminator_forward.1} parent=1 // loop_exit
      _
    %882 = vsyncpa [#allocation4], 1
    %s883 = scalar_lea.sflag [#allocation4], 1
    %884 = vsyncpa %s883, 1
    %885 = vsyncpa [#allocation6], 1

</llo_original>
